<compile_context>
chip_gen: v5e
topology: v5e:2x2
jax: 0.10.0
libtpu: 0.0.40
codegen_flags: <defaults>
</compile_context>

<pallas_src>
import functools

import jax
import jax.numpy as jnp
from jax.experimental import pallas as pl
from jax.experimental.pallas import tpu as pltpu


def dqn_kernel(x_ref, w1_ref, b1_ref, w2_ref, b2_ref, o_ref):
    # fc1: cast x -> bf16 in-kernel (VPU, rides under the MXU), f32 accumulate.
    x = x_ref[...].astype(w1_ref.dtype)
    h = jnp.dot(x, w1_ref[...], preferred_element_type=jnp.float32)
    # bias + ReLU fused on the f32 accumulator (VPU epilogue).
    h = jnp.maximum(h + b1_ref[...], 0.0)
    # fc2: single cast at the bf16 boundary, f32 accumulate, narrow-N store.
    o = jnp.dot(h.astype(w2_ref.dtype), w2_ref[...],
                preferred_element_type=jnp.float32)
    o_ref[...] = (o + b2_ref[...]).astype(o_ref.dtype)


def _round_up(n, m):
    return ((n + m - 1) // m) * m


def _choose_tile_b(batch):
    """Batch tile: big enough to amortize ~0.35us/grid-step overhead, multiple
    of 128 (MXU/sublane friendly), but keep >=2 grid steps when the batch is
    large so v7x's two TensorCores both get work."""
    b_ceil = _round_up(batch, 128)
    tile = min(512, b_ceil)
    if b_ceil >= 256:
        tile = min(tile, _round_up(pl.cdiv(b_ceil, 2), 128))
    return tile


def prepare_dqn_params(w1, b1, w2, b2, *, use_bf16=True):
    """One-time (per parameter update) prep: bf16 weights, f32 (1,N) biases.

    Keeps all weight-side casts/reshapes out of the per-call forward path.
    """
    wdt = jnp.bfloat16 if use_bf16 else w1.dtype
    return (w1.astype(wdt),
            b1.reshape(1, -1).astype(jnp.float32),
            w2.astype(wdt),
            b2.reshape(1, -1).astype(jnp.float32))


@functools.partial(jax.jit, static_argnames=("tile_b", "out_dtype"))
def dqn_forward(x, w1, b1, w2, b2, *, tile_b=None, out_dtype=None):
    """Fused DQN forward.

    x : (B, in)   native dtype (cast to w1.dtype inside the kernel)
    w1: (in, 256), w2: (256, out)  -- prepared via prepare_dqn_params (bf16)
    b1: (1, 256),  b2: (1, out)    -- f32
    Returns (B, out) in out_dtype (default x.dtype; pass jnp.bfloat16 to halve
    the output writeback if downstream tolerates it).
    """
    B, in_size = x.shape
    hidden = w1.shape[1]
    out_size = w2.shape[1]
    odt = x.dtype if out_dtype is None else out_dtype
    tb = _choose_tile_b(B) if tile_b is None else tile_b

    grid = (pl.cdiv(B, tb),)

    flops = 2 * B * (in_size * hidden + hidden * out_size)
    bytes_accessed = (
        B * in_size * x.dtype.itemsize
        + in_size * hidden * w1.dtype.itemsize
        + hidden * b1.dtype.itemsize
        + hidden * out_size * w2.dtype.itemsize
        + out_size * b2.dtype.itemsize
        + B * out_size * jnp.dtype(odt).itemsize)

    return pl.pallas_call(
        dqn_kernel,
        out_shape=jax.ShapeDtypeStruct((B, out_size), odt),
        grid_spec=pltpu.PrefetchScalarGridSpec(
            num_scalar_prefetch=0,
            grid=grid,
            in_specs=[
                # activations: tiled over batch; ragged last block handled by Pallas
                pl.BlockSpec((tb, in_size), lambda i: (i, 0)),
                # weights/biases: block index never changes -> resident in VMEM
                pl.BlockSpec((in_size, hidden), lambda i: (0, 0)),
                pl.BlockSpec((1, hidden), lambda i: (0, 0)),
                pl.BlockSpec((hidden, out_size), lambda i: (0, 0)),
                pl.BlockSpec((1, out_size), lambda i: (0, 0)),
            ],
            out_specs=pl.BlockSpec((tb, out_size), lambda i: (i, 0)),
        ),
        compiler_params=pltpu.CompilerParams(
            dimension_semantics=("parallel",),  # shard batch tiles across TCs (v7x)
        ),
        cost_estimate=pl.CostEstimate(
            flops=flops, transcendentals=0, bytes_accessed=bytes_accessed),
    )(x, w1, b1, w2, b2)


def init_dqn_params(key, in_size, out_size, hidden=256, dtype=jnp.float32):
    """Deterministic init mimicking nn.Linear default (uniform +/- 1/sqrt(fan_in))."""
    k1, k2, k3, k4 = jax.random.split(key, 4)
    bound1 = 1.0 / jnp.sqrt(in_size)
    bound2 = 1.0 / jnp.sqrt(hidden)
    w1 = jax.random.uniform(k1, (in_size, hidden), dtype, -bound1, bound1)
    b1 = jax.random.uniform(k2, (1, hidden), dtype, -bound1, bound1)
    w2 = jax.random.uniform(k3, (hidden, out_size), dtype, -bound2, bound2)
    b2 = jax.random.uniform(k4, (1, out_size), dtype, -bound2, bound2)
    return w1, b1, w2, b2


if __name__ == "__main__":
    key = jax.random.PRNGKey(0)
    k_params, k_x = jax.random.split(key)

    batch = 8        # small test shapes; ragged last block handled by Pallas
    in_size = 32     # e.g. state-vector size
    out_size = 8     # e.g. number of discrete actions

    w1, b1, w2, b2 = init_dqn_params(k_params, in_size, out_size)
    params = prepare_dqn_params(w1, b1, w2, b2)   # one-time weight prep
    x = jax.random.normal(k_x, (batch, in_size), dtype=jnp.float32)

    out = dqn_forward(x, *params)
    out = jax.block_until_ready(out)
    assert out.shape == (batch, out_size)
    assert out.dtype == x.dtype

    # Reference with the same bf16 operand rounding (f32 accumulation).
    xb = x.astype(jnp.bfloat16).astype(jnp.float32)
    w1b = w1.astype(jnp.bfloat16).astype(jnp.float32)
    w2b = w2.astype(jnp.bfloat16).astype(jnp.float32)
    h_ref = jnp.maximum(xb @ w1b + b1, 0.0)
    ref = h_ref.astype(jnp.bfloat16).astype(jnp.float32) @ w2b + b2
    assert jnp.allclose(out, ref, atol=1e-3, rtol=1e-3), (
        float(jnp.max(jnp.abs(out - ref))))

    # Sanity vs full-f32 math (loose: bf16 operand rounding only).
    ref_f32 = jnp.maximum(x @ w1 + b1, 0.0) @ w2 + b2
    assert jnp.allclose(out, ref_f32, atol=5e-2, rtol=5e-2)

    print("KERNEL_OK")
</pallas_src>

<mosaic_0001>
module attributes {stable_mosaic.version = 11 : i64} {
  func.func @dqn_kernel(%arg0: i32, %arg1: memref<128x32xf32, #tpu.memory_space<vmem>>, %arg2: memref<32x256xbf16, #tpu.memory_space<vmem>>, %arg3: memref<1x256xf32, #tpu.memory_space<vmem>>, %arg4: memref<256x8xbf16, #tpu.memory_space<vmem>>, %arg5: memref<1x8xf32, #tpu.memory_space<vmem>>, %arg6: memref<128x8xf32, #tpu.memory_space<vmem>>) attributes {dimension_semantics = [#tpu.dimension_semantics<parallel>], iteration_bounds = array<i64: 1>, scalar_prefetch = 0 : i64, scratch_operands = 0 : i64, tpu.core_type = #tpu.core_type<tc>, window_params = [{transform_indices = @transform_0, window_bounds = array<i64: 128, 32>}, {pipeline_mode = #tpu.pipeline_mode<synchronous>, transform_indices = @transform_1, window_bounds = array<i64: 32, 256>}, {pipeline_mode = #tpu.pipeline_mode<synchronous>, transform_indices = @transform_2, window_bounds = array<i64: 1, 256>}, {pipeline_mode = #tpu.pipeline_mode<synchronous>, transform_indices = @transform_3, window_bounds = array<i64: 256, 8>}, {pipeline_mode = #tpu.pipeline_mode<synchronous>, transform_indices = @transform_4, window_bounds = array<i64: 1, 8>}, {transform_indices = @transform_5, window_bounds = array<i64: 128, 8>}]} {
    %c0 = arith.constant 0 : index
    %c0_0 = arith.constant 0 : index
    %0 = vector.load %arg1[%c0, %c0_0] : memref<128x32xf32, #tpu.memory_space<vmem>>, vector<128x32xf32>
    %1 = arith.truncf %0 : vector<128x32xf32> to vector<128x32xbf16>
    %c0_1 = arith.constant 0 : index
    %c0_2 = arith.constant 0 : index
    %2 = vector.load %arg2[%c0_1, %c0_2] : memref<32x256xbf16, #tpu.memory_space<vmem>>, vector<32x256xbf16>
    %cst = arith.constant dense<0.000000e+00> : vector<128x256xf32>
    %3 = tpu.matmul %1, %2, %cst {dimension_numbers = #tpu.dot_dimension_numbers<[1], [0], [0], [1], [0, 0, 1, 1], [], []>} : vector<128x32xbf16>, vector<32x256xbf16>, vector<128x256xf32> -> vector<128x256xf32>
    %c0_3 = arith.constant 0 : index
    %c0_4 = arith.constant 0 : index
    %4 = vector.load %arg3[%c0_3, %c0_4] : memref<1x256xf32, #tpu.memory_space<vmem>>, vector<1x256xf32>
    %5 = vector.broadcast %4 : vector<1x256xf32> to vector<128x256xf32>
    %6 = arith.addf %3, %5 : vector<128x256xf32>
    %cst_5 = arith.constant 0.000000e+00 : f32
    %7 = vector.broadcast %cst_5 : f32 to vector<128x256xf32>
    %8 = arith.maximumf %6, %7 : vector<128x256xf32>
    %9 = arith.truncf %8 : vector<128x256xf32> to vector<128x256xbf16>
    %c0_6 = arith.constant 0 : index
    %c0_7 = arith.constant 0 : index
    %10 = vector.load %arg4[%c0_6, %c0_7] : memref<256x8xbf16, #tpu.memory_space<vmem>>, vector<256x8xbf16>
    %cst_8 = arith.constant dense<0.000000e+00> : vector<128x8xf32>
    %11 = tpu.matmul %9, %10, %cst_8 {dimension_numbers = #tpu.dot_dimension_numbers<[1], [0], [0], [1], [0, 0, 1, 1], [], []>} : vector<128x256xbf16>, vector<256x8xbf16>, vector<128x8xf32> -> vector<128x8xf32>
    %c0_9 = arith.constant 0 : index
    %c0_10 = arith.constant 0 : index
    %12 = vector.load %arg5[%c0_9, %c0_10] : memref<1x8xf32, #tpu.memory_space<vmem>>, vector<1x8xf32>
    %13 = vector.broadcast %12 : vector<1x8xf32> to vector<128x8xf32>
    %14 = arith.addf %11, %13 : vector<128x8xf32>
    %c0_11 = arith.constant 0 : index
    %c0_12 = arith.constant 0 : index
    %15 = vector.load %arg6[%c0_11, %c0_12] : memref<128x8xf32, #tpu.memory_space<vmem>>, vector<128x8xf32>
    tpu.vector_store %arg6[%c0_11, %c0_12], %14 {strides = array<i32>} : memref<128x8xf32, #tpu.memory_space<vmem>>, vector<128x8xf32>,
    return
  }
  func.func @transform_0(%arg0: i32) -> (i32, i32) {
    %c0_i32 = arith.constant 0 : i32
    %c0_i32_0 = arith.constant 0 : i32
    return %arg0, %c0_i32 : i32, i32
  }
  func.func @transform_1(%arg0: i32) -> (i32, i32) {
    %c0_i32 = arith.constant 0 : i32
    %c0_i32_0 = arith.constant 0 : i32
    %c0_i32_1 = arith.constant 0 : i32
    return %c0_i32, %c0_i32_0 : i32, i32
  }
  func.func @transform_2(%arg0: i32) -> (i32, i32) {
    %c0_i32 = arith.constant 0 : i32
    %c0_i32_0 = arith.constant 0 : i32
    %c0_i32_1 = arith.constant 0 : i32
    return %c0_i32, %c0_i32_0 : i32, i32
  }
  func.func @transform_3(%arg0: i32) -> (i32, i32) {
    %c0_i32 = arith.constant 0 : i32
    %c0_i32_0 = arith.constant 0 : i32
    %c0_i32_1 = arith.constant 0 : i32
    return %c0_i32, %c0_i32_0 : i32, i32
  }
  func.func @transform_4(%arg0: i32) -> (i32, i32) {
    %c0_i32 = arith.constant 0 : i32
    %c0_i32_0 = arith.constant 0 : i32
    %c0_i32_1 = arith.constant 0 : i32
    return %c0_i32, %c0_i32_0 : i32, i32
  }
  func.func @transform_5(%arg0: i32) -> (i32, i32) {
    %c0_i32 = arith.constant 0 : i32
    %c0_i32_0 = arith.constant 0 : i32
    return %arg0, %c0_i32 : i32, i32
  }
}

</mosaic_0001>

<llo_original>
// kernel: dqn_forward.1
$region0: #{dqn_forward.1}
  #allocation0 [shape = 'u32[]', space=smem, size = 0x4, offset = 0x4, fixed_abs, tag = 'smem constant byte address 0x4 - core index']
  #allocation1 [shape = 'u32[72,128]{1,0:T(1,128)}', space=vmem, size = 0x9000, scoped, tag = 'internal scratch']
  %s0 = inlined_call_operand.vmem [shape: f32[8,32], index: 0, kind: input, shape index: {}]
  %s1 = inlined_call_operand.vmem [shape: bf16[32,256], index: 1, kind: input, shape index: {}]
  %s2 = inlined_call_operand.vmem [shape: f32[1,256], index: 2, kind: input, shape index: {}]
  %s3 = inlined_call_operand.vmem [shape: bf16[256,8], index: 3, kind: input, shape index: {}]
  %s4 = inlined_call_operand.vmem [shape: f32[1,8], index: 4, kind: input, shape index: {}]
  %s5 = inlined_call_operand.hbm [shape: f32[8,8], index: 5, kind: output, shape index: {}]
  %s6 = sld [smem:[#allocation0]]
  $region30: #{dqn_forward.1} parent=0
    _
  %s8 = ssub.s32 1, %s6
  %s9 = scalar_select 0, %s8, %s6
  $region1: #{dqn_forward.1} parent=0
    #allocation2 [shape = 'u8[65536]{0}', space=vmem, size = 0x10000, scoped, tag = 'output window, operand 0, single buffered']
    #allocation3 [shape = 's32[1]{0}', space=sflag, size = 0x4, scoped, tag = 'scoped memory for dqn_forward.1']
    %10 = vsyncpa [#allocation3], 0
    // Predicated region
    $region2: #{dqn_forward.1} parent=1 // pred_check
      _
    $region3: #{dqn_forward.1} parent=1 // pred_check_branch
      %12 = sbr.rel (0) target = $region5
    $region4: #{dqn_forward.1} parent=1 // pred_region
      _
    $region5: #{dqn_forward.1} parent=1 // pred_fallthru
      _
    // Predicated region
    $region6: #{dqn_forward.1} parent=1 // pred_check
      _
    $region7: #{dqn_forward.1} parent=1 // pred_check_branch
      %14 = sbr.rel (0) target = $region9
    $region8: #{dqn_forward.1} parent=1 // pred_region
      _
    $region9: #{dqn_forward.1} parent=1 // pred_fallthru
      _
    // Predicated region
    $region10: #{dqn_forward.1} parent=1 // pred_check
      _
    $region11: #{dqn_forward.1} parent=1 // pred_check_branch
      %16 = sbr.rel (0) target = $region13
    $region12: #{dqn_forward.1} parent=1 // pred_region
      _
    $region13: #{dqn_forward.1} parent=1 // pred_fallthru
      _
    // Predicated region
    $region14: #{dqn_forward.1} parent=1 // pred_check
      _
    $region15: #{dqn_forward.1} parent=1 // pred_check_branch
      %18 = sbr.rel (0) target = $region17
    $region16: #{dqn_forward.1} parent=1 // pred_region
      _
    $region17: #{dqn_forward.1} parent=1 // pred_fallthru
      _
    // Predicated region
    $region18: #{dqn_forward.1} parent=1 // pred_check
      _
    $region19: #{dqn_forward.1} parent=1 // pred_check_branch
      %20 = sbr.rel (0) target = $region21
    $region20: #{dqn_forward.1} parent=1 // pred_region
      _
    $region21: #{dqn_forward.1} parent=1 // pred_fallthru
      _
    %v22 = vld [vmem:[%s0] sm:$0xff]
    %v23 = vld [vmem:[%s0 + $0x8] sm:$0xff]
    %v24 = vld [vmem:[%s0 + $0x10] sm:$0xff]
    %v25 = vld [vmem:[%s0 + $0x18] sm:$0xff]
    %v26 = vld [vmem:[%s0 + $0x20] sm:$0xff]
    %v27 = vld [vmem:[%s0 + $0x28] sm:$0xff]
    %v28 = vld [vmem:[%s0 + $0x30] sm:$0xff]
    %v29 = vld [vmem:[%s0 + $0x38] sm:$0xff]
    %v30 = vld [vmem:[%s0 + $0x40] sm:$0xff]
    %v31 = vld [vmem:[%s0 + $0x48] sm:$0xff]
    %v32 = vld [vmem:[%s0 + $0x50] sm:$0xff]
    %v33 = vld [vmem:[%s0 + $0x58] sm:$0xff]
    %v34 = vld [vmem:[%s0 + $0x60] sm:$0xff]
    %v35 = vld [vmem:[%s0 + $0x68] sm:$0xff]
    %v36 = vld [vmem:[%s0 + $0x70] sm:$0xff]
    %v37 = vld [vmem:[%s0 + $0x78] sm:$0xff]
    %v38 = vpack.c.bf16 %v23, %v22
    %v39 = vpack.c.bf16 %v25, %v24
    %v40 = vpack.c.bf16 %v27, %v26
    %v41 = vpack.c.bf16 %v29, %v28
    %v42 = vpack.c.bf16 %v31, %v30
    %v43 = vpack.c.bf16 %v33, %v32
    %v44 = vpack.c.bf16 %v35, %v34
    %v45 = vpack.c.bf16 %v37, %v36
    %v46 = vld [vmem:[%s1] sm:$0xff]
    %v47 = vld [vmem:[%s1 + $0x8] sm:$0xff]
    %v48 = vld [vmem:[%s1 + $0x10] sm:$0xff]
    %v49 = vld [vmem:[%s1 + $0x18] sm:$0xff]
    %v50 = vld [vmem:[%s2] sm:$0x3]
    %v52 = vperm.slane %v50, 0
    %v53 = vperm.slane %v50, 1
    %v60 = vunpack.c.l.b16 %v46
    %v61 = vunpack.c.h.b16 %v46
    %v62 = vunpack.c.l.b16 %v47
    %v63 = vunpack.c.h.b16 %v47
    %v64 = vunpack.c.l.b16 %v48
    %v65 = vunpack.c.h.b16 %v48
    %v66 = vunpack.c.l.b16 %v49
    %v67 = vunpack.c.h.b16 %v49
    %v68 = vpack.c.b16 %v62, %v60
    %v69 = vpack.c.b16 %v63, %v61
    %v70 = vpack.c.b16 %v66, %v64
    %v71 = vpack.c.b16 %v67, %v65
    %vm76 = vcmask 261120
    %v78 = vsel %vm76, %v38, 0
    %v81 = vsel %vm76, %v39, 0
    %v84 = vsel %vm76, %v40, 0
    %v87 = vsel %vm76, %v41, 0
    %v90 = vsel %vm76, %v42, 0
    %v93 = vsel %vm76, %v43, 0
    %v96 = vsel %vm76, %v44, 0
    %v99 = vsel %vm76, %v45, 0
    %101 = vmatpush.bf16.msra.mxu0 0
    %102 = vmatpush.bf16.msra.mxu0 0
    %103 = vmatpush.bf16.msra.mxu0 0
    %104 = vmatpush.bf16.msra.mxu0 0
    %105 = vmatpush.bf16.msra.mxu0 0
    %106 = vmatpush.bf16.msra.mxu0 0
    %107 = vmatpush.bf16.msra.mxu0 %v70
    %108 = vmatpush.bf16.msra.mxu0 %v68
    %109 = vmatmul.bf16.gmra.mxu0 %v78
    %v110 = vpop.f32.mrf.mxu0
    %v111 = vadd.f32 %v52, %v110
    %v112 = vpop.f32.mrf.mxu0
    %v113 = vadd.f32 %v52, %v112
    %114 = vmatmul.bf16.gmra.mxu0 %v81
    %v115 = vpop.f32.mrf.mxu0
    %v116 = vadd.f32 %v52, %v115
    %v117 = vpop.f32.mrf.mxu0
    %v118 = vadd.f32 %v52, %v117
    %119 = vmatmul.bf16.gmra.mxu0 %v84
    %v120 = vpop.f32.mrf.mxu0
    %v121 = vadd.f32 %v52, %v120
    %v122 = vpop.f32.mrf.mxu0
    %v123 = vadd.f32 %v52, %v122
    %124 = vmatmul.bf16.gmra.mxu0 %v87
    %v125 = vpop.f32.mrf.mxu0
    %v126 = vadd.f32 %v52, %v125
    %v127 = vpop.f32.mrf.mxu0
    %v128 = vadd.f32 %v52, %v127
    %129 = vmatmul.bf16.gmra.mxu0 %v90
    %v130 = vpop.f32.mrf.mxu0
    %v131 = vadd.f32 %v52, %v130
    %v132 = vpop.f32.mrf.mxu0
    %v133 = vadd.f32 %v52, %v132
    %134 = vmatmul.bf16.gmra.mxu0 %v93
    %v135 = vpop.f32.mrf.mxu0
    %v136 = vadd.f32 %v52, %v135
    %v137 = vpop.f32.mrf.mxu0
    %v138 = vadd.f32 %v52, %v137
    %139 = vmatmul.bf16.gmra.mxu0 %v96
    %v140 = vpop.f32.mrf.mxu0
    %v141 = vadd.f32 %v52, %v140
    %v142 = vpop.f32.mrf.mxu0
    %v143 = vadd.f32 %v52, %v142
    %144 = vmatmul.bf16.gmra.mxu0 %v99
    %v145 = vpop.f32.mrf.mxu0
    %v146 = vadd.f32 %v52, %v145
    %v147 = vpop.f32.mrf.mxu0
    %v148 = vadd.f32 %v52, %v147
    %149 = vdwg.mxu0
    %150 = vmatpush.bf16.msra.mxu0 0
    %151 = vmatpush.bf16.msra.mxu0 0
    %152 = vmatpush.bf16.msra.mxu0 0
    %153 = vmatpush.bf16.msra.mxu0 0
    %154 = vmatpush.bf16.msra.mxu0 0
    %155 = vmatpush.bf16.msra.mxu0 0
    %156 = vmatpush.bf16.msra.mxu0 %v71
    %157 = vmatpush.bf16.msra.mxu0 %v69
    %158 = vmatmul.bf16.gmra.mxu0 %v78
    %v159 = vpop.f32.mrf.mxu0
    %v160 = vadd.f32 %v53, %v159
    %v161 = vpop.f32.mrf.mxu0
    %v162 = vadd.f32 %v53, %v161
    %163 = vmatmul.bf16.gmra.mxu0 %v81
    %v164 = vpop.f32.mrf.mxu0
    %v165 = vadd.f32 %v53, %v164
    %v166 = vpop.f32.mrf.mxu0
    %v167 = vadd.f32 %v53, %v166
    %168 = vmatmul.bf16.gmra.mxu0 %v84
    %v169 = vpop.f32.mrf.mxu0
    %v170 = vadd.f32 %v53, %v169
    %v171 = vpop.f32.mrf.mxu0
    %v172 = vadd.f32 %v53, %v171
    %173 = vmatmul.bf16.gmra.mxu0 %v87
    %v174 = vpop.f32.mrf.mxu0
    %v175 = vadd.f32 %v53, %v174
    %v176 = vpop.f32.mrf.mxu0
    %v177 = vadd.f32 %v53, %v176
    %178 = vmatmul.bf16.gmra.mxu0 %v90
    %v179 = vpop.f32.mrf.mxu0
    %v180 = vadd.f32 %v53, %v179
    %v181 = vpop.f32.mrf.mxu0
    %v182 = vadd.f32 %v53, %v181
    %183 = vmatmul.bf16.gmra.mxu0 %v93
    %v184 = vpop.f32.mrf.mxu0
    %v185 = vadd.f32 %v53, %v184
    %v186 = vpop.f32.mrf.mxu0
    %v187 = vadd.f32 %v53, %v186
    %188 = vmatmul.bf16.gmra.mxu0 %v96
    %v189 = vpop.f32.mrf.mxu0
    %v190 = vadd.f32 %v53, %v189
    %v191 = vpop.f32.mrf.mxu0
    %v192 = vadd.f32 %v53, %v191
    %193 = vmatmul.bf16.gmra.mxu0 %v99
    %v194 = vpop.f32.mrf.mxu0
    %v195 = vadd.f32 %v53, %v194
    %v196 = vpop.f32.mrf.mxu0
    %v197 = vadd.f32 %v53, %v196
    %198 = vdwg.mxu0
    %v199 = vmax.f32 %v111, 0.0
    %v200 = vmax.f32 %v160, 0.0
    %v201 = vmax.f32 %v113, 0.0
    %v202 = vmax.f32 %v162, 0.0
    %v203 = vmax.f32 %v116, 0.0
    %v204 = vmax.f32 %v165, 0.0
    %v205 = vmax.f32 %v118, 0.0
    %v206 = vmax.f32 %v167, 0.0
    %v207 = vmax.f32 %v121, 0.0
    %v208 = vmax.f32 %v170, 0.0
    %v209 = vmax.f32 %v123, 0.0
    %v210 = vmax.f32 %v172, 0.0
    %v211 = vmax.f32 %v126, 0.0
    %v212 = vmax.f32 %v175, 0.0
    %v213 = vmax.f32 %v128, 0.0
    %v214 = vmax.f32 %v177, 0.0
    %v215 = vmax.f32 %v131, 0.0
    %v216 = vmax.f32 %v180, 0.0
    %v217 = vmax.f32 %v133, 0.0
    %v218 = vmax.f32 %v182, 0.0
    %v219 = vmax.f32 %v136, 0.0
    %v220 = vmax.f32 %v185, 0.0
    %v221 = vmax.f32 %v138, 0.0
    %v222 = vmax.f32 %v187, 0.0
    %v223 = vmax.f32 %v141, 0.0
    %v224 = vmax.f32 %v190, 0.0
    %v225 = vmax.f32 %v143, 0.0
    %v226 = vmax.f32 %v192, 0.0
    %v227 = vmax.f32 %v146, 0.0
    %v228 = vmax.f32 %v195, 0.0
    %v229 = vmax.f32 %v148, 0.0
    %v230 = vmax.f32 %v197, 0.0
    %v231 = vpack.c.bf16 %v201, %v199
    %v232 = vpack.c.bf16 %v202, %v200
    %v233 = vpack.c.bf16 %v205, %v203
    %v234 = vpack.c.bf16 %v206, %v204
    %v235 = vpack.c.bf16 %v209, %v207
    %v236 = vpack.c.bf16 %v210, %v208
    %v237 = vpack.c.bf16 %v213, %v211
    %v238 = vpack.c.bf16 %v214, %v212
    %v239 = vpack.c.bf16 %v217, %v215
    %v240 = vpack.c.bf16 %v218, %v216
    %v241 = vpack.c.bf16 %v221, %v219
    %v242 = vpack.c.bf16 %v222, %v220
    %v243 = vpack.c.bf16 %v225, %v223
    %v244 = vpack.c.bf16 %v226, %v224
    %v245 = vpack.c.bf16 %v229, %v227
    %v246 = vpack.c.bf16 %v230, %v228
    %v247 = vld [vmem:[%s3] sm:$0xf]
    %v248 = vld [vmem:[%s3 + $0x4] sm:$0xf]
    %v249 = vld [vmem:[%s3 + $0x8] sm:$0xf]
    %v250 = vld [vmem:[%s3 + $0xc] sm:$0xf]
    %v251 = vld [vmem:[%s3 + $0x10] sm:$0xf]
    %v252 = vld [vmem:[%s3 + $0x14] sm:$0xf]
    %v253 = vld [vmem:[%s3 + $0x18] sm:$0xf]
    %v254 = vld [vmem:[%s3 + $0x1c] sm:$0xf]
    %v255 = vld [vmem:[%s3 + $0x20] sm:$0xf]
    %v256 = vld [vmem:[%s3 + $0x24] sm:$0xf]
    %v257 = vld [vmem:[%s3 + $0x28] sm:$0xf]
    %v258 = vld [vmem:[%s3 + $0x2c] sm:$0xf]
    %v259 = vld [vmem:[%s3 + $0x30] sm:$0xf]
    %v260 = vld [vmem:[%s3 + $0x34] sm:$0xf]
    %v261 = vld [vmem:[%s3 + $0x38] sm:$0xf]
    %v262 = vld [vmem:[%s3 + $0x3c] sm:$0xf]
    %v263 = vld [vmem:[%s3 + $0x40] sm:$0xf]
    %v264 = vld [vmem:[%s3 + $0x44] sm:$0xf]
    %v265 = vld [vmem:[%s3 + $0x48] sm:$0xf]
    %v266 = vld [vmem:[%s3 + $0x4c] sm:$0xf]
    %v267 = vld [vmem:[%s3 + $0x50] sm:$0xf]
    %v268 = vld [vmem:[%s3 + $0x54] sm:$0xf]
    %v269 = vld [vmem:[%s3 + $0x58] sm:$0xf]
    %v270 = vld [vmem:[%s3 + $0x5c] sm:$0xf]
    %v271 = vld [vmem:[%s3 + $0x60] sm:$0xf]
    %v272 = vld [vmem:[%s3 + $0x64] sm:$0xf]
    %v273 = vld [vmem:[%s3 + $0x68] sm:$0xf]
    %v274 = vld [vmem:[%s3 + $0x6c] sm:$0xf]
    %v275 = vld [vmem:[%s3 + $0x70] sm:$0xf]
    %v276 = vld [vmem:[%s3 + $0x74] sm:$0xf]
    %v277 = vld [vmem:[%s3 + $0x78] sm:$0xf]
    %v278 = vld [vmem:[%s3 + $0x7c] sm:$0xf]
    %v279 = vld [vmem:[%s4] sm:$0x1]
    %v281 = vperm.slane %v279, 0
    %v315 = vunpack.c.l.b16 %v247
    %v316 = vunpack.c.l.b16 %v248
    %v317 = vunpack.c.l.b16 %v249
    %v318 = vunpack.c.l.b16 %v250
    %v319 = vunpack.c.l.b16 %v251
    %v320 = vunpack.c.l.b16 %v252
    %v321 = vunpack.c.l.b16 %v253
    %v322 = vunpack.c.l.b16 %v254
    %v323 = vunpack.c.l.b16 %v255
    %v324 = vunpack.c.l.b16 %v256
    %v325 = vunpack.c.l.b16 %v257
    %v326 = vunpack.c.l.b16 %v258
    %v327 = vunpack.c.l.b16 %v259
    %v328 = vunpack.c.l.b16 %v260
    %v329 = vunpack.c.l.b16 %v261
    %v330 = vunpack.c.l.b16 %v262
    %v331 = vunpack.c.l.b16 %v263
    %v332 = vunpack.c.l.b16 %v264
    %v333 = vunpack.c.l.b16 %v265
    %v334 = vunpack.c.l.b16 %v266
    %v335 = vunpack.c.l.b16 %v267
    %v336 = vunpack.c.l.b16 %v268
    %v337 = vunpack.c.l.b16 %v269
    %v338 = vunpack.c.l.b16 %v270
    %v339 = vunpack.c.l.b16 %v271
    %v340 = vunpack.c.l.b16 %v272
    %v341 = vunpack.c.l.b16 %v273
    %v342 = vunpack.c.l.b16 %v274
    %v343 = vunpack.c.l.b16 %v275
    %v344 = vunpack.c.l.b16 %v276
    %v345 = vunpack.c.l.b16 %v277
    %v346 = vunpack.c.l.b16 %v278
    %v347 = vpack.c.b16 %v316, %v315
    %v348 = vpack.c.b16 %v318, %v317
    %v349 = vpack.c.b16 %v320, %v319
    %v350 = vpack.c.b16 %v322, %v321
    %v351 = vpack.c.b16 %v324, %v323
    %v352 = vpack.c.b16 %v326, %v325
    %v353 = vpack.c.b16 %v328, %v327
    %v354 = vpack.c.b16 %v330, %v329
    %v355 = vpack.c.b16 %v332, %v331
    %v356 = vpack.c.b16 %v334, %v333
    %v357 = vpack.c.b16 %v336, %v335
    %v358 = vpack.c.b16 %v338, %v337
    %v359 = vpack.c.b16 %v340, %v339
    %v360 = vpack.c.b16 %v342, %v341
    %v361 = vpack.c.b16 %v344, %v343
    %v362 = vpack.c.b16 %v346, %v345
    %379 = vmatpush.bf16.msra.mxu0 %v354
    %380 = vmatpush.bf16.msra.mxu0 %v353
    %381 = vmatpush.bf16.msra.mxu0 %v352
    %382 = vmatpush.bf16.msra.mxu0 %v351
    %383 = vmatpush.bf16.msra.mxu0 %v350
    %384 = vmatpush.bf16.msra.mxu0 %v349
    %385 = vmatpush.bf16.msra.mxu0 %v348
    %386 = vmatpush.bf16.msra.mxu0 %v347
    %387 = vmatmul.bf16.gmra.mxu0 %v231
    %v388 = vpop.f32.mrf.mxu0
    %v389 = vadd.f32 %v281, %v388
    %v390 = vpop.f32.mrf.mxu0
    %v391 = vadd.f32 %v281, %v390
    %392 = vmatmul.bf16.gmra.mxu0 %v233
    %v393 = vpop.f32.mrf.mxu0
    %v394 = vadd.f32 %v281, %v393
    %v395 = vpop.f32.mrf.mxu0
    %v396 = vadd.f32 %v281, %v395
    %397 = vmatmul.bf16.gmra.mxu0 %v235
    %v398 = vpop.f32.mrf.mxu0
    %v399 = vadd.f32 %v281, %v398
    %v400 = vpop.f32.mrf.mxu0
    %v401 = vadd.f32 %v281, %v400
    %402 = vmatmul.bf16.gmra.mxu0 %v237
    %v403 = vpop.f32.mrf.mxu0
    %v404 = vadd.f32 %v281, %v403
    %v405 = vpop.f32.mrf.mxu0
    %v406 = vadd.f32 %v281, %v405
    %407 = vmatmul.bf16.gmra.mxu0 %v239
    %v408 = vpop.f32.mrf.mxu0
    %v409 = vadd.f32 %v281, %v408
    %v410 = vpop.f32.mrf.mxu0
    %v411 = vadd.f32 %v281, %v410
    %412 = vmatmul.bf16.gmra.mxu0 %v241
    %v413 = vpop.f32.mrf.mxu0
    %v414 = vadd.f32 %v281, %v413
    %v415 = vpop.f32.mrf.mxu0
    %v416 = vadd.f32 %v281, %v415
    %417 = vmatmul.bf16.gmra.mxu0 %v243
    %v418 = vpop.f32.mrf.mxu0
    %v419 = vadd.f32 %v281, %v418
    %v420 = vpop.f32.mrf.mxu0
    %v421 = vadd.f32 %v281, %v420
    %422 = vmatmul.bf16.gmra.mxu0 %v245
    %v423 = vpop.f32.mrf.mxu0
    %v424 = vadd.f32 %v281, %v423
    %v425 = vpop.f32.mrf.mxu0
    %v426 = vadd.f32 %v281, %v425
    %427 = vdwg.mxu0
    %428 = vmatpush.bf16.msra.mxu0 %v362
    %429 = vmatpush.bf16.msra.mxu0 %v361
    %430 = vmatpush.bf16.msra.mxu0 %v360
    %431 = vmatpush.bf16.msra.mxu0 %v359
    %432 = vmatpush.bf16.msra.mxu0 %v358
    %433 = vmatpush.bf16.msra.mxu0 %v357
    %434 = vmatpush.bf16.msra.mxu0 %v356
    %435 = vmatpush.bf16.msra.mxu0 %v355
    %436 = vmatmul.bf16.gmra.mxu0 %v232
    %v437 = vpop.f32.mrf.mxu0
    %v438 = vadd.f32 %v389, %v437
    %v439 = vpop.f32.mrf.mxu0
    %v440 = vadd.f32 %v391, %v439
    %441 = vmatmul.bf16.gmra.mxu0 %v234
    %v442 = vpop.f32.mrf.mxu0
    %v443 = vadd.f32 %v394, %v442
    %v444 = vpop.f32.mrf.mxu0
    %v445 = vadd.f32 %v396, %v444
    %446 = vmatmul.bf16.gmra.mxu0 %v236
    %v447 = vpop.f32.mrf.mxu0
    %v448 = vadd.f32 %v399, %v447
    %v449 = vpop.f32.mrf.mxu0
    %v450 = vadd.f32 %v401, %v449
    %451 = vmatmul.bf16.gmra.mxu0 %v238
    %v452 = vpop.f32.mrf.mxu0
    %v453 = vadd.f32 %v404, %v452
    %v454 = vpop.f32.mrf.mxu0
    %v455 = vadd.f32 %v406, %v454
    %456 = vmatmul.bf16.gmra.mxu0 %v240
    %v457 = vpop.f32.mrf.mxu0
    %v458 = vadd.f32 %v409, %v457
    %v459 = vpop.f32.mrf.mxu0
    %v460 = vadd.f32 %v411, %v459
    %461 = vmatmul.bf16.gmra.mxu0 %v242
    %v462 = vpop.f32.mrf.mxu0
    %v463 = vadd.f32 %v414, %v462
    %v464 = vpop.f32.mrf.mxu0
    %v465 = vadd.f32 %v416, %v464
    %466 = vmatmul.bf16.gmra.mxu0 %v244
    %v467 = vpop.f32.mrf.mxu0
    %v468 = vadd.f32 %v419, %v467
    %v469 = vpop.f32.mrf.mxu0
    %v470 = vadd.f32 %v421, %v469
    %471 = vmatmul.bf16.gmra.mxu0 %v246
    %v472 = vpop.f32.mrf.mxu0
    %v473 = vadd.f32 %v424, %v472
    %v474 = vpop.f32.mrf.mxu0
    %v475 = vadd.f32 %v426, %v474
    %476 = vdwg.mxu0
    %vm477 = vcmask 64512
    %478 = vst.msk [vmem:[#allocation2] sm:$0xff] %vm477, %v438
    %479 = vst.msk [vmem:[#allocation2 + $0x8] sm:$0xff] %vm477, %v440
    %480 = vst.msk [vmem:[#allocation2 + $0x10] sm:$0xff] %vm477, %v443
    %481 = vst.msk [vmem:[#allocation2 + $0x18] sm:$0xff] %vm477, %v445
    %482 = vst.msk [vmem:[#allocation2 + $0x20] sm:$0xff] %vm477, %v448
    %483 = vst.msk [vmem:[#allocation2 + $0x28] sm:$0xff] %vm477, %v450
    %484 = vst.msk [vmem:[#allocation2 + $0x30] sm:$0xff] %vm477, %v453
    %485 = vst.msk [vmem:[#allocation2 + $0x38] sm:$0xff] %vm477, %v455
    %486 = vst.msk [vmem:[#allocation2 + $0x40] sm:$0xff] %vm477, %v458
    %487 = vst.msk [vmem:[#allocation2 + $0x48] sm:$0xff] %vm477, %v460
    %488 = vst.msk [vmem:[#allocation2 + $0x50] sm:$0xff] %vm477, %v463
    %489 = vst.msk [vmem:[#allocation2 + $0x58] sm:$0xff] %vm477, %v465
    %490 = vst.msk [vmem:[#allocation2 + $0x60] sm:$0xff] %vm477, %v468
    %491 = vst.msk [vmem:[#allocation2 + $0x68] sm:$0xff] %vm477, %v470
    %492 = vst.msk [vmem:[#allocation2 + $0x70] sm:$0xff] %vm477, %v473
    %493 = vst.msk [vmem:[#allocation2 + $0x78] sm:$0xff] %vm477, %v475
    // Predicated region
    $region22: #{dqn_forward.1} parent=1 // pred_check
      _
    $region23: #{dqn_forward.1} parent=1 // pred_check_branch
      %495 = sbr.rel (0) target = $region25
    $region24: #{dqn_forward.1} parent=1 // pred_region
      %497 = vsyncadd [#allocation3], 1920
      %s498 = sshll.u32 [#allocation2], 4
      %s499 = int_to_ptr.vmem [resolvable:$true] %s498
      %s500 = sshll.u32 %s5, 4
      %s501 = int_to_ptr.hbm [resolvable:$true] %s500
      %506 = dma.vmem_to_hbm [thread:$0]  %s499, 128, %s501, [#allocation3], 128, 128, 8
    $region25: #{dqn_forward.1} parent=1 // pred_fallthru
      _
    // Predicated region
    $region26: #{dqn_forward.1} parent=1 // pred_check
      _
    $region27: #{dqn_forward.1} parent=1 // pred_check_branch
      %508 = sbr.rel (0) target = $region29
    $region28: #{dqn_forward.1} parent=1 // pred_region
      %510 = dma.done [#allocation3], 2048
    $region29: #{dqn_forward.1} parent=1 // pred_fallthru
      _
    %511 = vsyncpa [#allocation3], 1

</llo_original>
